<compile_context>
chip_gen: v5e
topology: v5e:2x2
jax: 0.10.0
libtpu: 0.0.40
codegen_flags: <defaults>
</compile_context>

<pallas_src>
import jax
import jax.numpy as jnp
from jax.experimental import pallas as pl
from jax.experimental.pallas import tpu as pltpu


OUT_PAD = 128  # lane-dense in-VMEM logits width; the real 2 classes are columns 0..1


def _round_up(n, m):
    return ((n + m - 1) // m) * m


def classnet_kernel(x_ref, w1_ref, b1_ref, w2_ref, b2_ref, o_ref):
    # fc1: bf16 MXU matmul, f32 accumulation; bias + ReLU in f32 on the VPU.
    h = jnp.dot(x_ref[...], w1_ref[...], preferred_element_type=jnp.float32)
    h = jnp.maximum(h + b1_ref[...], 0.0)

    # x.view(-1, hidden_size) is a no-op here: h is already [tb, hidden].
    # NOTE: h is cast f32 -> bf16 before fc2 (one extra rounding vs an f32 reference).

    # fc2 on a 128-wide lane-dense padded-logits layout (in-VMEM compute shape only).
    logits = jnp.dot(h.astype(w2_ref.dtype), w2_ref[...],
                     preferred_element_type=jnp.float32) + b2_ref[...]

    # log_softmax along dim=1 (numerically stable).  Padded columns carry zero
    # weights and a -1e30 bias, so they never win the max and contribute
    # exp(.) == 0 to the sum (safe while real logits stay finite and > -1e30).
    m = jnp.max(logits, axis=-1, keepdims=True)
    shifted = logits - m
    lse = jnp.log(jnp.sum(jnp.exp(shifted), axis=-1, keepdims=True))

    # Only the real classes are written back to HBM; padding never leaves VMEM.
    o_ref[...] = (shifted - lse)[:, : o_ref.shape[-1]].astype(o_ref.dtype)


def prepare_params(w1, b1, w2, b2, out_pad=OUT_PAD):
    """One-time parameter prep (hoisted out of the per-call path).

    nn.Linear layout in:  w1 [hidden, in], b1 [hidden], w2 [out, hidden], b2 [out].
    Returns bf16 [in, hidden] / [hidden, out_pad] matmul operands and f32 2-D biases.
    Padded fc2 columns get zero weights and a -1e30 bias (inert in log_softmax).
    """
    hidden, _ = w1.shape
    out_dim = w2.shape[0]
    w1_t = jnp.asarray(w1, jnp.float32).T.astype(jnp.bfloat16)            # [in, hidden]
    b1_2d = jnp.asarray(b1, jnp.float32).reshape(1, hidden)
    w2_t = jnp.zeros((hidden, out_pad), jnp.bfloat16)
    w2_t = w2_t.at[:, :out_dim].set(jnp.asarray(w2, jnp.float32).T.astype(jnp.bfloat16))
    b2_2d = jnp.full((1, out_pad), -1e30, jnp.float32)
    b2_2d = b2_2d.at[:, :out_dim].set(jnp.asarray(b2, jnp.float32))
    return w1_t, b1_2d, w2_t, b2_2d, out_dim


def classnet_forward(x, w1_t, b1_2d, w2_t, b2_2d, out_dim, *, batch_tile=2048):
    """Fused fc1 -> ReLU -> fc2 -> log_softmax.  x: [B, input_size]."""
    B, in_dim = x.shape
    hidden = w1_t.shape[1]
    out_pad = w2_t.shape[1]

    # bf16 batch tile: multiple of 16 (bf16 packs 16 sublanes/vreg); cap at padded B.
    tb = min(batch_tile, _round_up(B, 16))
    tb = _round_up(tb, 16)
    # Ensure >= 2 grid steps so the "parallel" batch axis can shard across both
    # TensorCores on v7x (no effect on single-TC v5e/v6e; skipped for tiny B).
    if _round_up(B, tb) // tb < 2 and tb >= 32:
        tb = _round_up(tb // 2, 16)
    b_pad = _round_up(B, tb)

    # Pad fuses with the bf16 cast (no extra zeros + dynamic-update-slice pass);
    # skipped entirely when B already divides into the tile.
    x_bf16 = x.astype(jnp.bfloat16)
    if b_pad != B:
        x_bf16 = jnp.pad(x_bf16, ((0, b_pad - B), (0, 0)))

    out = pl.pallas_call(
        classnet_kernel,
        out_shape=jax.ShapeDtypeStruct((b_pad, out_dim), jnp.float32),
        grid=(b_pad // tb,),
        in_specs=[
            # x is the only streaming input (double-buffered by default; if DMA is
            # still exposed at very large tiles, pipeline_mode=pl.Buffered(3) here
            # is the cheap lever — the matmuls themselves are not the bottleneck).
            pl.BlockSpec((tb, in_dim), lambda i: (i, 0)),       # x: batch-tiled
            pl.BlockSpec((in_dim, hidden), lambda i: (0, 0)),   # w1: VMEM-resident
            pl.BlockSpec((1, hidden), lambda i: (0, 0)),        # b1
            pl.BlockSpec((hidden, out_pad), lambda i: (0, 0)),  # w2 (lane-padded)
            pl.BlockSpec((1, out_pad), lambda i: (0, 0)),       # b2 (padded w/ -1e30)
        ],
        # Narrow output: only the real classes are written back.
        out_specs=pl.BlockSpec((tb, out_dim), lambda i: (i, 0)),
        compiler_params=pltpu.CompilerParams(
            dimension_semantics=("parallel",),  # shard batch axis across TCs (v7x)
            vmem_limit_bytes=48 << 20,          # below v7x 64 MiB physical per TC
        ),
    )(x_bf16, w1_t, b1_2d, w2_t, b2_2d)

    # Strip batch padding (column padding never left VMEM).
    return out[:B] if b_pad != B else out


if __name__ == "__main__":
    # Small shapes consistent with the module; B deliberately not a multiple of a
    # larger tile, batch_tile=16 to exercise the multi-step grid path.
    B, IN, HIDDEN, OUT = 48, 128, 256, 2

    key = jax.random.PRNGKey(0)
    kx, kw1, kb1, kw2, kb2 = jax.random.split(key, 5)

    x = jax.random.normal(kx, (B, IN), dtype=jnp.float32)
    # nn.Linear convention: weight [out, in], bias [out].
    w1 = jax.random.normal(kw1, (HIDDEN, IN), dtype=jnp.float32) * 0.05
    b1 = jax.random.normal(kb1, (HIDDEN,), dtype=jnp.float32) * 0.05
    w2 = jax.random.normal(kw2, (OUT, HIDDEN), dtype=jnp.float32) * 0.05
    b2 = jax.random.normal(kb2, (OUT,), dtype=jnp.float32) * 0.05

    # One-time parameter prep (transpose / bf16 cast / lane padding), then forward.
    w1_t, b1_2d, w2_t, b2_2d, out_dim = prepare_params(w1, b1, w2, b2)
    out = classnet_forward(x, w1_t, b1_2d, w2_t, b2_2d, out_dim, batch_tile=16)
    out = jax.block_until_ready(out)

    # Sanity check vs pure-JAX f32 reference (bf16 matmuls -> loose tolerance).
    h_ref = jnp.maximum(x @ w1.T + b1, 0.0)
    logits_ref = h_ref @ w2.T + b2
    ref = jax.nn.log_softmax(logits_ref, axis=1)

    assert out.shape == (B, OUT), f"bad shape {out.shape}"
    assert bool(jnp.all(jnp.isfinite(out))), "non-finite outputs"
    assert jnp.allclose(out, ref, atol=5e-2, rtol=0.0), "mismatch vs reference"
    # log_softmax rows must exponentiate-sum to ~1.
    assert jnp.allclose(jnp.sum(jnp.exp(out), axis=1), 1.0, atol=1e-2)

    print("KERNEL_OK")
</pallas_src>

<mosaic_0001>
module attributes {stable_mosaic.version = 11 : i64} {
  func.func @classnet_kernel(%arg0: i32, %arg1: memref<16x128xbf16, #tpu.memory_space<vmem>>, %arg2: memref<128x256xbf16, #tpu.memory_space<vmem>>, %arg3: memref<1x256xf32, #tpu.memory_space<vmem>>, %arg4: memref<256x128xbf16, #tpu.memory_space<vmem>>, %arg5: memref<1x128xf32, #tpu.memory_space<vmem>>, %arg6: memref<16x2xf32, #tpu.memory_space<vmem>>) attributes {dimension_semantics = [#tpu.dimension_semantics<parallel>], iteration_bounds = array<i64: 3>, scalar_prefetch = 0 : i64, scratch_operands = 0 : i64, tpu.core_type = #tpu.core_type<tc>, window_params = [{transform_indices = @transform_0, window_bounds = array<i64: 16, 128>}, {pipeline_mode = #tpu.pipeline_mode<synchronous>, transform_indices = @transform_1, window_bounds = array<i64: 128, 256>}, {pipeline_mode = #tpu.pipeline_mode<synchronous>, transform_indices = @transform_2, window_bounds = array<i64: 1, 256>}, {pipeline_mode = #tpu.pipeline_mode<synchronous>, transform_indices = @transform_3, window_bounds = array<i64: 256, 128>}, {pipeline_mode = #tpu.pipeline_mode<synchronous>, transform_indices = @transform_4, window_bounds = array<i64: 1, 128>}, {transform_indices = @transform_5, window_bounds = array<i64: 16, 2>}]} {
    %c0 = arith.constant 0 : index
    %c0_0 = arith.constant 0 : index
    %0 = vector.load %arg1[%c0, %c0_0] : memref<16x128xbf16, #tpu.memory_space<vmem>>, vector<16x128xbf16>
    %c0_1 = arith.constant 0 : index
    %c0_2 = arith.constant 0 : index
    %1 = vector.load %arg2[%c0_1, %c0_2] : memref<128x256xbf16, #tpu.memory_space<vmem>>, vector<128x256xbf16>
    %cst = arith.constant dense<0.000000e+00> : vector<16x256xf32>
    %2 = tpu.matmul %0, %1, %cst {dimension_numbers = #tpu.dot_dimension_numbers<[1], [0], [0], [1], [0, 0, 1, 1], [], []>} : vector<16x128xbf16>, vector<128x256xbf16>, vector<16x256xf32> -> vector<16x256xf32>
    %c0_3 = arith.constant 0 : index
    %c0_4 = arith.constant 0 : index
    %3 = vector.load %arg3[%c0_3, %c0_4] : memref<1x256xf32, #tpu.memory_space<vmem>>, vector<1x256xf32>
    %4 = vector.broadcast %3 : vector<1x256xf32> to vector<16x256xf32>
    %5 = arith.addf %2, %4 : vector<16x256xf32>
    %cst_5 = arith.constant 0.000000e+00 : f32
    %6 = vector.broadcast %cst_5 : f32 to vector<16x256xf32>
    %7 = arith.maximumf %5, %6 : vector<16x256xf32>
    %8 = arith.truncf %7 : vector<16x256xf32> to vector<16x256xbf16>
    %c0_6 = arith.constant 0 : index
    %c0_7 = arith.constant 0 : index
    %9 = vector.load %arg4[%c0_6, %c0_7] : memref<256x128xbf16, #tpu.memory_space<vmem>>, vector<256x128xbf16>
    %cst_8 = arith.constant dense<0.000000e+00> : vector<16x128xf32>
    %10 = tpu.matmul %8, %9, %cst_8 {dimension_numbers = #tpu.dot_dimension_numbers<[1], [0], [0], [1], [0, 0, 1, 1], [], []>} : vector<16x256xbf16>, vector<256x128xbf16>, vector<16x128xf32> -> vector<16x128xf32>
    %c0_9 = arith.constant 0 : index
    %c0_10 = arith.constant 0 : index
    %11 = vector.load %arg5[%c0_9, %c0_10] : memref<1x128xf32, #tpu.memory_space<vmem>>, vector<1x128xf32>
    %12 = vector.broadcast %11 : vector<1x128xf32> to vector<16x128xf32>
    %13 = arith.addf %10, %12 : vector<16x128xf32>
    %cst_11 = arith.constant dense<0xFF800000> : vector<16xf32>
    %14 = vector.multi_reduction <maximumf>, %13, %cst_11 [1] : vector<16x128xf32> to vector<16xf32>
    %15 = vector.shape_cast %14 : vector<16xf32> to vector<16x1xf32>
    %16 = vector.broadcast %15 : vector<16x1xf32> to vector<16x128xf32>
    %17 = arith.subf %13, %16 : vector<16x128xf32>
    %18 = math.exp %17 : vector<16x128xf32>
    %cst_12 = arith.constant dense<0.000000e+00> : vector<16xf32>
    %19 = vector.multi_reduction <add>, %18, %cst_12 [1] : vector<16x128xf32> to vector<16xf32>
    %20 = vector.shape_cast %19 : vector<16xf32> to vector<16x1xf32>
    %21 = math.log %20 : vector<16x1xf32>
    %22 = vector.broadcast %21 : vector<16x1xf32> to vector<16x128xf32>
    %23 = arith.subf %17, %22 : vector<16x128xf32>
    %24 = vector.extract_strided_slice %23 {offsets = [0, 0], sizes = [16, 2], strides = [1, 1]} : vector<16x128xf32> to vector<16x2xf32>
    %c0_13 = arith.constant 0 : index
    %c0_14 = arith.constant 0 : index
    %25 = vector.load %arg6[%c0_13, %c0_14] : memref<16x2xf32, #tpu.memory_space<vmem>>, vector<16x2xf32>
    tpu.vector_store %arg6[%c0_13, %c0_14], %24 {strides = array<i32>} : memref<16x2xf32, #tpu.memory_space<vmem>>, vector<16x2xf32>,
    return
  }
  func.func @transform_0(%arg0: i32) -> (i32, i32) {
    %c0_i32 = arith.constant 0 : i32
    %c0_i32_0 = arith.constant 0 : i32
    return %arg0, %c0_i32 : i32, i32
  }
  func.func @transform_1(%arg0: i32) -> (i32, i32) {
    %c0_i32 = arith.constant 0 : i32
    %c0_i32_0 = arith.constant 0 : i32
    %c0_i32_1 = arith.constant 0 : i32
    return %c0_i32, %c0_i32_0 : i32, i32
  }
  func.func @transform_2(%arg0: i32) -> (i32, i32) {
    %c0_i32 = arith.constant 0 : i32
    %c0_i32_0 = arith.constant 0 : i32
    %c0_i32_1 = arith.constant 0 : i32
    return %c0_i32, %c0_i32_0 : i32, i32
  }
  func.func @transform_3(%arg0: i32) -> (i32, i32) {
    %c0_i32 = arith.constant 0 : i32
    %c0_i32_0 = arith.constant 0 : i32
    %c0_i32_1 = arith.constant 0 : i32
    return %c0_i32, %c0_i32_0 : i32, i32
  }
  func.func @transform_4(%arg0: i32) -> (i32, i32) {
    %c0_i32 = arith.constant 0 : i32
    %c0_i32_0 = arith.constant 0 : i32
    %c0_i32_1 = arith.constant 0 : i32
    return %c0_i32, %c0_i32_0 : i32, i32
  }
  func.func @transform_5(%arg0: i32) -> (i32, i32) {
    %c0_i32 = arith.constant 0 : i32
    %c0_i32_0 = arith.constant 0 : i32
    return %arg0, %c0_i32 : i32, i32
  }
}

</mosaic_0001>

<llo_original>
// kernel: tpu_custom_call.1
$region0: #{tpu_custom_call.1}
  #allocation0 [shape = 'u32[]', space=smem, size = 0x4, offset = 0x4, fixed_abs, tag = 'smem constant byte address 0x4 - core index']
  #allocation1 [shape = 'u32[72,128]{1,0:T(1,128)}', space=vmem, size = 0x9000, scoped, tag = 'internal scratch']
  %s0 = inlined_call_operand.hbm [shape: bf16[48,128], index: 0, kind: input, shape index: {}]
  %s1 = inlined_call_operand.hbm [shape: bf16[128,256], index: 1, kind: input, shape index: {}]
  %s2 = inlined_call_operand.hbm [shape: f32[1,256], index: 2, kind: input, shape index: {}]
  %s3 = inlined_call_operand.hbm [shape: bf16[256,128], index: 3, kind: input, shape index: {}]
  %s4 = inlined_call_operand.vmem [shape: f32[1,128], index: 4, kind: input, shape index: {}]
  %s5 = inlined_call_operand.vmem [shape: f32[48,2], index: 5, kind: output, shape index: {}]
  %s6 = sld [smem:[#allocation0]]
  $region69: #{tpu_custom_call.1} parent=0
    _
  %s8 = ssub.s32 1, %s6
  %s9 = scalar_select 0, %s8, %s6
  $region1: #{tpu_custom_call.1} parent=0
    #allocation2 [shape = 'u8[8192]{0}', space=vmem, size = 0x2000, scoped, tag = 'input window, operand 0']
    #allocation3 [shape = 's32[2]{0}', space=sflag, size = 0x8, scoped, tag = 'scoped memory for tpu_custom_call.1']
    #allocation4 [shape = 'u8[65536]{0}', space=vmem, size = 0x10000, scoped, tag = 'input window, operand 1, single buffered']
    #allocation5 [shape = 's32[1]{0}', space=sflag, size = 0x4, scoped, tag = 'scoped memory for tpu_custom_call.1']
    #allocation6 [shape = 'u8[1024]{0}', space=vmem, size = 0x400, scoped, tag = 'input window, operand 2, single buffered']
    #allocation7 [shape = 'u8[65536]{0}', space=vmem, size = 0x10000, scoped, tag = 'input window, operand 3, single buffered']
    #allocation8 [shape = 's32[1]{0}', space=sflag, size = 0x4, scoped, tag = 'scoped memory for tpu_custom_call.1']
    %10 = vsyncpa [#allocation3], 0
    %s11 = scalar_lea.sflag [#allocation3], 1
    %12 = vsyncpa %s11, 0
    %13 = vsyncpa [#allocation5], 0
    %14 = vsyncpa [#allocation8], 0
    loop: start=0, step=1, limit=5
    $region2: #{tpu_custom_call.1} parent=1 // loop_pre_header
      _
    $region3: #{tpu_custom_call.1} parent=1 // loop_header
      %s16 = sphi 0, %s20
      %p17 = scmp.ge.s32.totalorder %s16, 5
      %s26 = sphi 0, %s28
      %s29 = sphi 0, %s26
      %s30 = sphi 0, %s29
      %s46 = sphi 0, %s30
      %s50 = sphi 0, %s50
      %s52 = sphi 0, %s50
      %s53 = sphi 0, %s52
      %s67 = sphi 0, %s53
      %s71 = sphi 0, %s71
      %s73 = sphi 0, %s71
      %s74 = sphi 0, %s73
      %s88 = sphi 0, %s74
      %s92 = sphi 0, %s92
      %s94 = sphi 0, %s92
      %s95 = sphi 0, %s94
      %s109 = sphi 0, %s95
      %s113 = sphi 0, %s113
      %s115 = sphi 0, %s113
      %s116 = sphi 0, %s115
      %s130 = sphi 0, %s116
      %s136 = sphi 0, %s138
      %s139 = sphi 0, %s136
      %s140 = sphi 0, %s139
      %s156 = sphi 0, %s140
    $region4: #{tpu_custom_call.1} parent=1 // loop_header_branch
      %19 = sbr.rel (%p17) target = $region8
    $region5: #{tpu_custom_call.1} parent=1 // loop_body
      %s21 = ssub.s32 %s16, 1
      %s22 = ssub.s32 %s16, 2
      %s23 = sadd.s32 %s16, 1
      %s24 = ssub.s32 %s16, %s23
      %p25 = scmp.eq.s32.totalorder %s24, 0
      %s27 = sadd.s32 %s26, 1
      %s28 = scalar_select %p25, %s26, %s27
      %p31 = pneg %p25
      %p32 = scmp.eq.s32.totalorder %s16, 2
      %p33 = por %p31, %p32
      %p34 = scmp.ne.s32.totalorder %s26, %s29
      %p35 = scmp.eq.s32.totalorder %s16, 0
      %p36 = por %p34, %p35
      %p37 = scmp.ne.s32.totalorder %s26, %s29
      %p38 = scmp.eq.s32.totalorder %s21, 2
      %p39 = por %p37, %p38
      %p40 = scmp.ne.s32.totalorder %s29, %s30
      %p41 = scmp.eq.s32.totalorder %s21, 0
      %p42 = por %p40, %p41
      %p43 = scmp.ne.s32.totalorder %s29, %s30
      %p44 = scmp.eq.s32.totalorder %s22, 2
      %p45 = por %p43, %p44
      %p47 = scmp.ne.s32.totalorder %s30, %s46
      %p48 = scmp.eq.s32.totalorder %s22, 0
      %p49 = por %p47, %p48
      %s51 = sadd.s32 %s50, 1
      %p54 = scmp.eq.s32.totalorder %s16, 2
      %p55 = scmp.ne.s32.totalorder %s50, %s52
      %p56 = scmp.eq.s32.totalorder %s16, 0
      %p57 = por %p55, %p56
      %p58 = scmp.ne.s32.totalorder %s50, %s52
      %p59 = scmp.eq.s32.totalorder %s21, 2
      %p60 = por %p58, %p59
      %p61 = scmp.ne.s32.totalorder %s52, %s53
      %p62 = scmp.eq.s32.totalorder %s21, 0
      %p63 = por %p61, %p62
      %p64 = scmp.ne.s32.totalorder %s52, %s53
      %p65 = scmp.eq.s32.totalorder %s22, 2
      %p66 = por %p64, %p65
      %p68 = scmp.ne.s32.totalorder %s53, %s67
      %p69 = scmp.eq.s32.totalorder %s22, 0
      %p70 = por %p68, %p69
      %s72 = sadd.s32 %s71, 1
      %p75 = scmp.eq.s32.totalorder %s16, 2
      %p76 = scmp.ne.s32.totalorder %s71, %s73
      %p77 = scmp.eq.s32.totalorder %s16, 0
      %p78 = por %p76, %p77
      %p79 = scmp.ne.s32.totalorder %s71, %s73
      %p80 = scmp.eq.s32.totalorder %s21, 2
      %p81 = por %p79, %p80
      %p82 = scmp.ne.s32.totalorder %s73, %s74
      %p83 = scmp.eq.s32.totalorder %s21, 0
      %p84 = por %p82, %p83
      %p85 = scmp.ne.s32.totalorder %s73, %s74
      %p86 = scmp.eq.s32.totalorder %s22, 2
      %p87 = por %p85, %p86
      %p89 = scmp.ne.s32.totalorder %s74, %s88
      %p90 = scmp.eq.s32.totalorder %s22, 0
      %p91 = por %p89, %p90
      %s93 = sadd.s32 %s92, 1
      %p96 = scmp.eq.s32.totalorder %s16, 2
      %p97 = scmp.ne.s32.totalorder %s92, %s94
      %p98 = scmp.eq.s32.totalorder %s16, 0
      %p99 = por %p97, %p98
      %p100 = scmp.ne.s32.totalorder %s92, %s94
      %p101 = scmp.eq.s32.totalorder %s21, 2
      %p102 = por %p100, %p101
      %p103 = scmp.ne.s32.totalorder %s94, %s95
      %p104 = scmp.eq.s32.totalorder %s21, 0
      %p105 = por %p103, %p104
      %p106 = scmp.ne.s32.totalorder %s94, %s95
      %p107 = scmp.eq.s32.totalorder %s22, 2
      %p108 = por %p106, %p107
      %p110 = scmp.ne.s32.totalorder %s95, %s109
      %p111 = scmp.eq.s32.totalorder %s22, 0
      %p112 = por %p110, %p111
      %s114 = sadd.s32 %s113, 1
      %p117 = scmp.eq.s32.totalorder %s16, 2
      %p118 = scmp.ne.s32.totalorder %s113, %s115
      %p119 = scmp.eq.s32.totalorder %s16, 0
      %p120 = por %p118, %p119
      %p121 = scmp.ne.s32.totalorder %s113, %s115
      %p122 = scmp.eq.s32.totalorder %s21, 2
      %p123 = por %p121, %p122
      %p124 = scmp.ne.s32.totalorder %s115, %s116
      %p125 = scmp.eq.s32.totalorder %s21, 0
      %p126 = por %p124, %p125
      %p127 = scmp.ne.s32.totalorder %s115, %s116
      %p128 = scmp.eq.s32.totalorder %s22, 2
      %p129 = por %p127, %p128
      %p131 = scmp.ne.s32.totalorder %s116, %s130
      %p132 = scmp.eq.s32.totalorder %s22, 0
      %p133 = por %p131, %p132
      %s134 = ssub.s32 %s16, %s23
      %p135 = scmp.eq.s32.totalorder %s134, 0
      %s137 = sadd.s32 %s136, 1
      %s138 = scalar_select %p135, %s136, %s137
      %p141 = pneg %p135
      %p142 = scmp.eq.s32.totalorder %s16, 2
      %p143 = por %p141, %p142
      %p144 = scmp.ne.s32.totalorder %s136, %s139
      %p145 = scmp.eq.s32.totalorder %s16, 0
      %p146 = por %p144, %p145
      %p147 = scmp.ne.s32.totalorder %s136, %s139
      %p148 = scmp.eq.s32.totalorder %s21, 2
      %p149 = por %p147, %p148
      %p150 = scmp.ne.s32.totalorder %s139, %s140
      %p151 = scmp.eq.s32.totalorder %s21, 0
      %p152 = por %p150, %p151
      %p153 = scmp.ne.s32.totalorder %s139, %s140
      %p154 = scmp.eq.s32.totalorder %s22, 2
      %p155 = por %p153, %p154
      %p157 = scmp.ne.s32.totalorder %s140, %s156
      %p158 = scmp.eq.s32.totalorder %s22, 0
      %p159 = por %p157, %p158
      %p160 = scmp.le.s32.totalorder 1, %s16
      %p161 = scmp.lt.s32.totalorder %s16, 4
      %p162 = pnand %p160, %p161
      %p163 = pneg %p162
      // Predicated region
      $region9: #{tpu_custom_call.1} parent=5 // pred_check
        _
      $region10: #{tpu_custom_call.1} parent=5 // pred_check_branch
        %165 = sbr.rel (%p162) target = $region12
      $region11: #{tpu_custom_call.1} parent=5 // pred_region
        %s166 = ssub.s32 %s16, 1
        // Predicated region
        $region13: #{tpu_custom_call.1} parent=11 // pred_check
          %p167 = pneg %p63
        $region14: #{tpu_custom_call.1} parent=11 // pred_check_branch
          %169 = sbr.rel (%p167) target = $region16
        $region15: #{tpu_custom_call.1} parent=11 // pred_region
          %171 = vsyncadd [#allocation5], 0
          %s172 = sshll.u32 %s1, 4
          %s173 = int_to_ptr.hbm [resolvable:$true] %s172
          %s174 = sshll.u32 [#allocation4], 4
          %s175 = int_to_ptr.vmem [resolvable:$true] %s174
          %180 = dma.hbm_to_vmem [thread:$0]  %s173, 2048, %s175, [#allocation5], 128, 128, 8
        $region16: #{tpu_custom_call.1} parent=11 // pred_fallthru
          _
        // Predicated region
        $region17: #{tpu_custom_call.1} parent=11 // pred_check
          %p181 = pneg %p84
        $region18: #{tpu_custom_call.1} parent=11 // pred_check_branch
          %183 = sbr.rel (%p181) target = $region20
        $region19: #{tpu_custom_call.1} parent=11 // pred_region
          %185 = vsyncadd [#allocation5], 0
          %s187 = sshll.u32 %s2, 4
          %s188 = int_to_ptr.hbm [resolvable:$true] %s187
          %s189 = sshll.u32 [#allocation6], 4
          %s190 = int_to_ptr.vmem [resolvable:$true] %s189
          %192 = dma.hbm_to_vmem [thread:$0]  %s188, 32, %s190, [#allocation5]
        $region20: #{tpu_custom_call.1} parent=11 // pred_fallthru
          _
        // Predicated region
        $region21: #{tpu_custom_call.1} parent=11 // pred_check
          %p193 = pneg %p105
        $region22: #{tpu_custom_call.1} parent=11 // pred_check_branch
          %195 = sbr.rel (%p193) target = $region24
        $region23: #{tpu_custom_call.1} parent=11 // pred_region
          %197 = vsyncadd [#allocation8], 0
          %s198 = sshll.u32 %s3, 4
          %s199 = int_to_ptr.hbm [resolvable:$true] %s198
          %s200 = sshll.u32 [#allocation7], 4
          %s201 = int_to_ptr.vmem [resolvable:$true] %s200
          %206 = dma.hbm_to_vmem [thread:$0]  %s199, 2048, %s201, [#allocation8], 64, 64, 4
        $region24: #{tpu_custom_call.1} parent=11 // pred_fallthru
          _
        // Predicated region
        $region25: #{tpu_custom_call.1} parent=11 // pred_check
          %p207 = pneg %p126
        $region26: #{tpu_custom_call.1} parent=11 // pred_check_branch
          %209 = sbr.rel (%p207) target = $region28
        $region27: #{tpu_custom_call.1} parent=11 // pred_region
          _
        $region28: #{tpu_custom_call.1} parent=11 // pred_fallthru
          _
      $region12: #{tpu_custom_call.1} parent=5 // pred_fallthru
        _
      %p210 = scmp.lt.s32.totalorder %s16, 3
      // Predicated region
      $region29: #{tpu_custom_call.1} parent=5 // pred_check
        %p211 = pneg %p210
      $region30: #{tpu_custom_call.1} parent=5 // pred_check_branch
        %213 = sbr.rel (%p211) target = $region32
      $region31: #{tpu_custom_call.1} parent=5 // pred_region
        // Predicated region
        $region33: #{tpu_custom_call.1} parent=31 // pred_check
          %p214 = pneg %p36
        $region34: #{tpu_custom_call.1} parent=31 // pred_check_branch
          %216 = sbr.rel (%p214) target = $region36
        $region35: #{tpu_custom_call.1} parent=31 // pred_region
          %s217 = sand.u32 %s26, 1
          %s218 = scalar_lea.sflag [#allocation3], %s217
          %s219 = sand.u32 %s26, 1
          %s220 = smul.addr %s219, 8
          %s221 = scalar_lea.vmem [#allocation2], %s220
          %s222 = smul.u32 2, %s16
          %224 = vsyncadd %s218, 0
          %s225 = smul.addr %s222, 4
          %s226 = scalar_lea.hbm %s0, %s225
          %s227 = sshll.u32 %s226, 4
          %s228 = int_to_ptr.hbm [resolvable:$true] %s227
          %s229 = sshll.u32 %s221, 4
          %s230 = int_to_ptr.vmem [resolvable:$true] %s229
          %235 = dma.hbm_to_vmem [thread:$0]  %s228, 128, %s230, %s218, 64, 64, 4
        $region36: #{tpu_custom_call.1} parent=31 // pred_fallthru
          _
      $region32: #{tpu_custom_call.1} parent=5 // pred_fallthru
        _
      %p236 = scmp.le.s32.totalorder 1, %s16
      %p237 = scmp.lt.s32.totalorder %s16, 4
      %p238 = pnand %p236, %p237
      %p239 = pneg %p238
      // Predicated region
      $region37: #{tpu_custom_call.1} parent=5 // pred_check
        _
      $region38: #{tpu_custom_call.1} parent=5 // pred_check_branch
        %241 = sbr.rel (%p238) target = $region40
      $region39: #{tpu_custom_call.1} parent=5 // pred_region
        %s242 = ssub.s32 %s16, 1
        %s243 = sand.u32 %s29, 1
        %s244 = scalar_lea.sflag [#allocation3], %s243
        %s245 = sand.u32 %s29, 1
        %s246 = smul.addr %s245, 8
        %s247 = scalar_lea.vmem [#allocation2], %s246
        // Predicated region
        $region41: #{tpu_custom_call.1} parent=39 // pred_check
          %p248 = pneg %p42
        $region42: #{tpu_custom_call.1} parent=39 // pred_check_branch
          %250 = sbr.rel (%p248) target = $region44
        $region43: #{tpu_custom_call.1} parent=39 // pred_region
          %252 = dma.done %s244, 128
        $region44: #{tpu_custom_call.1} parent=39 // pred_fallthru
          _
        // Predicated region
        $region45: #{tpu_custom_call.1} parent=39 // pred_check
          %p253 = pneg %p63
        $region46: #{tpu_custom_call.1} parent=39 // pred_check_branch
          %255 = sbr.rel (%p253) target = $region48
        $region47: #{tpu_custom_call.1} parent=39 // pred_region
          %257 = dma.done [#allocation5], 2048
        $region48: #{tpu_custom_call.1} parent=39 // pred_fallthru
          _
        // Predicated region
        $region49: #{tpu_custom_call.1} parent=39 // pred_check
          %p258 = pneg %p84
        $region50: #{tpu_custom_call.1} parent=39 // pred_check_branch
          %260 = sbr.rel (%p258) target = $region52
        $region51: #{tpu_custom_call.1} parent=39 // pred_region
          %262 = dma.done [#allocation5], 32
        $region52: #{tpu_custom_call.1} parent=39 // pred_fallthru
          _
        // Predicated region
        $region53: #{tpu_custom_call.1} parent=39 // pred_check
          %p263 = pneg %p105
        $region54: #{tpu_custom_call.1} parent=39 // pred_check_branch
          %265 = sbr.rel (%p263) target = $region56
        $region55: #{tpu_custom_call.1} parent=39 // pred_region
          %267 = dma.done [#allocation8], 2048
        $region56: #{tpu_custom_call.1} parent=39 // pred_fallthru
          _
        %s268 = sand.u32 %s29, 1
        %s269 = scalar_lea.sflag [#allocation3], %s268
        %s270 = sand.u32 %s29, 1
        %s271 = smul.addr %s270, 8
        %s272 = scalar_lea.vmem [#allocation2], %s271
        %p273 = pneg %p42
        %p274 = pneg %p39
        %p275 = pneg %p63
        %p276 = pneg %p60
        %p277 = pneg %p84
        %p278 = pneg %p81
        %p279 = pneg %p105
        %p280 = pneg %p102
        %p281 = pneg %p126
        %p282 = pneg %p123
        %p283 = pneg %p152
        %p284 = pneg %p149
        %s285 = smul.u32 2, %s21
        %p286 = scmp.lt.s32.totalorder %s285, 5
        %s287 = scalar_select %p286, %s285, 5
        %s288 = smul.addr %s287, 8
        %s289 = scalar_lea.vmem %s5, %s288
        %s290 = smul.u32 2, %s21
        %s291 = smul.u32 2, %s21
        %p292 = scmp.lt.s32.totalorder %s291, 5
        %s293 = scalar_select %p292, %s291, 5
        %s294 = smul.addr %s293, 8
        %s295 = scalar_lea.vmem %s5, %s294
        %s296 = smul.u32 2, %s21
        %v297 = vld [vmem:[%s247] sm:$0xf]
        %v298 = vld [vmem:[%s247 + $0x4] sm:$0xf]
        %v299 = vld [vmem:[#allocation4] sm:$0xff]
        %v300 = vld [vmem:[#allocation4 + $0x8] sm:$0xff]
        %v301 = vld [vmem:[#allocation4 + $0x10] sm:$0xff]
        %v302 = vld [vmem:[#allocation4 + $0x18] sm:$0xff]
        %v303 = vld [vmem:[#allocation4 + $0x20] sm:$0xff]
        %v304 = vld [vmem:[#allocation4 + $0x28] sm:$0xff]
        %v305 = vld [vmem:[#allocation4 + $0x30] sm:$0xff]
        %v306 = vld [vmem:[#allocation4 + $0x38] sm:$0xff]
        %v307 = vld [vmem:[#allocation4 + $0x40] sm:$0xff]
        %v308 = vld [vmem:[#allocation4 + $0x48] sm:$0xff]
        %v309 = vld [vmem:[#allocation4 + $0x50] sm:$0xff]
        %v310 = vld [vmem:[#allocation4 + $0x58] sm:$0xff]
        %v311 = vld [vmem:[#allocation4 + $0x60] sm:$0xff]
        %v312 = vld [vmem:[#allocation4 + $0x68] sm:$0xff]
        %v313 = vld [vmem:[#allocation4 + $0x70] sm:$0xff]
        %v314 = vld [vmem:[#allocation4 + $0x78] sm:$0xff]
        %v315 = vld [vmem:[#allocation6] sm:$0x3]
        %v317 = vperm.slane %v315, 0
        %v318 = vperm.slane %v315, 1
        %v323 = vunpack.c.l.b16 %v297
        %v324 = vunpack.c.l.b16 %v298
        %v325 = vpack.c.b16 %v324, %v323
        %v343 = vunpack.c.l.b16 %v299
        %v344 = vunpack.c.h.b16 %v299
        %v345 = vunpack.c.l.b16 %v300
        %v346 = vunpack.c.h.b16 %v300
        %v347 = vunpack.c.l.b16 %v301
        %v348 = vunpack.c.h.b16 %v301
        %v349 = vunpack.c.l.b16 %v302
        %v350 = vunpack.c.h.b16 %v302
        %v351 = vunpack.c.l.b16 %v303
        %v352 = vunpack.c.h.b16 %v303
        %v353 = vunpack.c.l.b16 %v304
        %v354 = vunpack.c.h.b16 %v304
        %v355 = vunpack.c.l.b16 %v305
        %v356 = vunpack.c.h.b16 %v305
        %v357 = vunpack.c.l.b16 %v306
        %v358 = vunpack.c.h.b16 %v306
        %v359 = vunpack.c.l.b16 %v307
        %v360 = vunpack.c.h.b16 %v307
        %v361 = vunpack.c.l.b16 %v308
        %v362 = vunpack.c.h.b16 %v308
        %v363 = vunpack.c.l.b16 %v309
        %v364 = vunpack.c.h.b16 %v309
        %v365 = vunpack.c.l.b16 %v310
        %v366 = vunpack.c.h.b16 %v310
        %v367 = vunpack.c.l.b16 %v311
        %v368 = vunpack.c.h.b16 %v311
        %v369 = vunpack.c.l.b16 %v312
        %v370 = vunpack.c.h.b16 %v312
        %v371 = vunpack.c.l.b16 %v313
        %v372 = vunpack.c.h.b16 %v313
        %v373 = vunpack.c.l.b16 %v314
        %v374 = vunpack.c.h.b16 %v314
        %v375 = vpack.c.b16 %v345, %v343
        %v376 = vpack.c.b16 %v346, %v344
        %v377 = vpack.c.b16 %v349, %v347
        %v378 = vpack.c.b16 %v350, %v348
        %v379 = vpack.c.b16 %v353, %v351
        %v380 = vpack.c.b16 %v354, %v352
        %v381 = vpack.c.b16 %v357, %v355
        %v382 = vpack.c.b16 %v358, %v356
        %v383 = vpack.c.b16 %v361, %v359
        %v384 = vpack.c.b16 %v362, %v360
        %v385 = vpack.c.b16 %v365, %v363
        %v386 = vpack.c.b16 %v366, %v364
        %v387 = vpack.c.b16 %v369, %v367
        %v388 = vpack.c.b16 %v370, %v368
        %v389 = vpack.c.b16 %v373, %v371
        %v390 = vpack.c.b16 %v374, %v372
        %407 = vmatpush.bf16.msra.mxu0 %v389
        %408 = vmatpush.bf16.msra.mxu0 %v387
        %409 = vmatpush.bf16.msra.mxu0 %v385
        %410 = vmatpush.bf16.msra.mxu0 %v383
        %411 = vmatpush.bf16.msra.mxu0 %v381
        %412 = vmatpush.bf16.msra.mxu0 %v379
        %413 = vmatpush.bf16.msra.mxu0 %v377
        %414 = vmatpush.bf16.msra.mxu0 %v375
        %415 = vmatmul.bf16.gmra.mxu0 %v325
        %v416 = vpop.f32.mrf.mxu0
        %v417 = vadd.f32 %v317, %v416
        %v418 = vpop.f32.mrf.mxu0
        %v419 = vadd.f32 %v317, %v418
        %420 = vdwg.mxu0
        %421 = vmatpush.bf16.msra.mxu0 %v390
        %422 = vmatpush.bf16.msra.mxu0 %v388
        %423 = vmatpush.bf16.msra.mxu0 %v386
        %424 = vmatpush.bf16.msra.mxu0 %v384
        %425 = vmatpush.bf16.msra.mxu0 %v382
        %426 = vmatpush.bf16.msra.mxu0 %v380
        %427 = vmatpush.bf16.msra.mxu0 %v378
        %428 = vmatpush.bf16.msra.mxu0 %v376
        %429 = vmatmul.bf16.gmra.mxu0 %v325
        %v430 = vpop.f32.mrf.mxu0
        %v431 = vadd.f32 %v318, %v430
        %v432 = vpop.f32.mrf.mxu0
        %v433 = vadd.f32 %v318, %v432
        %434 = vdwg.mxu0
        %v435 = vmax.f32 %v417, 0.0
        %v436 = vmax.f32 %v431, 0.0
        %v437 = vmax.f32 %v419, 0.0
        %v438 = vmax.f32 %v433, 0.0
        %v439 = vpack.c.bf16 %v437, %v435
        %v440 = vpack.c.bf16 %v438, %v436
        %v441 = vld [vmem:[#allocation7] sm:$0xf]
        %v442 = vld [vmem:[#allocation7 + $0x4] sm:$0xf]
        %v443 = vld [vmem:[#allocation7 + $0x8] sm:$0xf]
        %v444 = vld [vmem:[#allocation7 + $0xc] sm:$0xf]
        %v445 = vld [vmem:[#allocation7 + $0x10] sm:$0xf]
        %v446 = vld [vmem:[#allocation7 + $0x14] sm:$0xf]
        %v447 = vld [vmem:[#allocation7 + $0x18] sm:$0xf]
        %v448 = vld [vmem:[#allocation7 + $0x1c] sm:$0xf]
        %v449 = vld [vmem:[#allocation7 + $0x20] sm:$0xf]
        %v450 = vld [vmem:[#allocation7 + $0x24] sm:$0xf]
        %v451 = vld [vmem:[#allocation7 + $0x28] sm:$0xf]
        %v452 = vld [vmem:[#allocation7 + $0x2c] sm:$0xf]
        %v453 = vld [vmem:[#allocation7 + $0x30] sm:$0xf]
        %v454 = vld [vmem:[#allocation7 + $0x34] sm:$0xf]
        %v455 = vld [vmem:[#allocation7 + $0x38] sm:$0xf]
        %v456 = vld [vmem:[#allocation7 + $0x3c] sm:$0xf]
        %v457 = vld [vmem:[#allocation7 + $0x40] sm:$0xf]
        %v458 = vld [vmem:[#allocation7 + $0x44] sm:$0xf]
        %v459 = vld [vmem:[#allocation7 + $0x48] sm:$0xf]
        %v460 = vld [vmem:[#allocation7 + $0x4c] sm:$0xf]
        %v461 = vld [vmem:[#allocation7 + $0x50] sm:$0xf]
        %v462 = vld [vmem:[#allocation7 + $0x54] sm:$0xf]
        %v463 = vld [vmem:[#allocation7 + $0x58] sm:$0xf]
        %v464 = vld [vmem:[#allocation7 + $0x5c] sm:$0xf]
        %v465 = vld [vmem:[#allocation7 + $0x60] sm:$0xf]
        %v466 = vld [vmem:[#allocation7 + $0x64] sm:$0xf]
        %v467 = vld [vmem:[#allocation7 + $0x68] sm:$0xf]
        %v468 = vld [vmem:[#allocation7 + $0x6c] sm:$0xf]
        %v469 = vld [vmem:[#allocation7 + $0x70] sm:$0xf]
        %v470 = vld [vmem:[#allocation7 + $0x74] sm:$0xf]
        %v471 = vld [vmem:[#allocation7 + $0x78] sm:$0xf]
        %v472 = vld [vmem:[#allocation7 + $0x7c] sm:$0xf]
        %v473 = vld [vmem:[%s4] sm:$0x1]
        %v475 = vperm.slane %v473, 0
        %v509 = vunpack.c.l.b16 %v441
        %v510 = vunpack.c.l.b16 %v442
        %v511 = vunpack.c.l.b16 %v443
        %v512 = vunpack.c.l.b16 %v444
        %v513 = vunpack.c.l.b16 %v445
        %v514 = vunpack.c.l.b16 %v446
        %v515 = vunpack.c.l.b16 %v447
        %v516 = vunpack.c.l.b16 %v448
        %v517 = vunpack.c.l.b16 %v449
        %v518 = vunpack.c.l.b16 %v450
        %v519 = vunpack.c.l.b16 %v451
        %v520 = vunpack.c.l.b16 %v452
        %v521 = vunpack.c.l.b16 %v453
        %v522 = vunpack.c.l.b16 %v454
        %v523 = vunpack.c.l.b16 %v455
        %v524 = vunpack.c.l.b16 %v456
        %v525 = vunpack.c.l.b16 %v457
        %v526 = vunpack.c.l.b16 %v458
        %v527 = vunpack.c.l.b16 %v459
        %v528 = vunpack.c.l.b16 %v460
        %v529 = vunpack.c.l.b16 %v461
        %v530 = vunpack.c.l.b16 %v462
        %v531 = vunpack.c.l.b16 %v463
        %v532 = vunpack.c.l.b16 %v464
        %v533 = vunpack.c.l.b16 %v465
        %v534 = vunpack.c.l.b16 %v466
        %v535 = vunpack.c.l.b16 %v467
        %v536 = vunpack.c.l.b16 %v468
        %v537 = vunpack.c.l.b16 %v469
        %v538 = vunpack.c.l.b16 %v470
        %v539 = vunpack.c.l.b16 %v471
        %v540 = vunpack.c.l.b16 %v472
        %v541 = vpack.c.b16 %v510, %v509
        %v542 = vpack.c.b16 %v512, %v511
        %v543 = vpack.c.b16 %v514, %v513
        %v544 = vpack.c.b16 %v516, %v515
        %v545 = vpack.c.b16 %v518, %v517
        %v546 = vpack.c.b16 %v520, %v519
        %v547 = vpack.c.b16 %v522, %v521
        %v548 = vpack.c.b16 %v524, %v523
        %v549 = vpack.c.b16 %v526, %v525
        %v550 = vpack.c.b16 %v528, %v527
        %v551 = vpack.c.b16 %v530, %v529
        %v552 = vpack.c.b16 %v532, %v531
        %v553 = vpack.c.b16 %v534, %v533
        %v554 = vpack.c.b16 %v536, %v535
        %v555 = vpack.c.b16 %v538, %v537
        %v556 = vpack.c.b16 %v540, %v539
        %573 = vmatpush.bf16.msra.mxu0 %v548
        %574 = vmatpush.bf16.msra.mxu0 %v547
        %575 = vmatpush.bf16.msra.mxu0 %v546
        %576 = vmatpush.bf16.msra.mxu0 %v545
        %577 = vmatpush.bf16.msra.mxu0 %v544
        %578 = vmatpush.bf16.msra.mxu0 %v543
        %579 = vmatpush.bf16.msra.mxu0 %v542
        %580 = vmatpush.bf16.msra.mxu0 %v541
        %581 = vmatmul.bf16.gmra.mxu0 %v439
        %v582 = vpop.f32.mrf.mxu0
        %v583 = vadd.f32 %v475, %v582
        %v584 = vpop.f32.mrf.mxu0
        %v585 = vadd.f32 %v475, %v584
        %586 = vdwg.mxu0
        %587 = vmatpush.bf16.msra.mxu0 %v556
        %588 = vmatpush.bf16.msra.mxu0 %v555
        %589 = vmatpush.bf16.msra.mxu0 %v554
        %590 = vmatpush.bf16.msra.mxu0 %v553
        %591 = vmatpush.bf16.msra.mxu0 %v552
        %592 = vmatpush.bf16.msra.mxu0 %v551
        %593 = vmatpush.bf16.msra.mxu0 %v550
        %594 = vmatpush.bf16.msra.mxu0 %v549
        %595 = vmatmul.bf16.gmra.mxu0 %v440
        %v596 = vpop.f32.mrf.mxu0
        %v597 = vadd.f32 %v583, %v596
        %v598 = vpop.f32.mrf.mxu0
        %v599 = vadd.f32 %v585, %v598
        %600 = vdwg.mxu0
        %601 = vmax.xlane.f32.xlu0 %v597
        %v602 = vpop.xlane.xlu0 %601
        %603 = vmax.xlane.f32.xlu0 %v599
        %v604 = vpop.xlane.xlu0 %603
        %v605 = vsub.f32 %v597, %v602
        %v606 = vsub.f32 %v599, %v604
        %v607 = vmul.f32 %v605, 1.442695
        %v608 = vpow.pop %v607
        %v609 = vmul.f32 %v606, 1.442695
        %v610 = vpow.pop %v609
        %611 = vadd.xlane.f32.xlu0 %v608
        %v612 = vpop.xlane.xlu0 %611
        %613 = vadd.xlane.f32.xlu0 %v610
        %v614 = vpop.xlane.xlu0 %613
        %v615 = vlog2.pop %v612
        %v616 = vmul.f32 %v615, 0.6931472
        %v617 = vlog2.pop %v614
        %v618 = vmul.f32 %v617, 0.6931472
        %v619 = vsub.f32 %v605, %v616
        %v620 = vsub.f32 %v606, %v618
        %vm621 = vcmask 15360
        %622 = vst.msk [vmem:[%s295] sm:$0xff] %vm621, %v619
        %623 = vst.msk [vmem:[%s295 + $0x8] sm:$0xff] %vm621, %v620
        %s624 = smul.u32 2, %s21
        %p625 = scmp.lt.s32.totalorder %s624, 5
        %s626 = scalar_select %p625, %s624, 5
        %s627 = smul.addr %s626, 8
        %s628 = scalar_lea.vmem %s5, %s627
        // Predicated region
        $region57: #{tpu_custom_call.1} parent=39 // pred_check
          %p629 = pneg %p149
        $region58: #{tpu_custom_call.1} parent=39 // pred_check_branch
          %631 = sbr.rel (%p629) target = $region60
        $region59: #{tpu_custom_call.1} parent=39 // pred_region
          %s632 = smul.u32 2, %s21
        $region60: #{tpu_custom_call.1} parent=39 // pred_fallthru
          _
      $region40: #{tpu_custom_call.1} parent=5 // pred_fallthru
        _
      %p633 = scmp.le.s32.totalorder 2, %s16
      // Predicated region
      $region61: #{tpu_custom_call.1} parent=5 // pred_check
        %p634 = pneg %p633
      $region62: #{tpu_custom_call.1} parent=5 // pred_check_branch
        %636 = sbr.rel (%p634) target = $region64
      $region63: #{tpu_custom_call.1} parent=5 // pred_region
        %s637 = ssub.s32 %s16, 2
        // Predicated region
        $region65: #{tpu_custom_call.1} parent=63 // pred_check
          %p638 = pneg %p155
        $region66: #{tpu_custom_call.1} parent=63 // pred_check_branch
          %640 = sbr.rel (%p638) target = $region68
        $region67: #{tpu_custom_call.1} parent=63 // pred_region
          %s641 = smul.u32 2, %s22
          %p642 = scmp.lt.s32.totalorder %s641, 5
          %s643 = scalar_select %p642, %s641, 5
          %s644 = smul.addr %s643, 8
          %s645 = scalar_lea.vmem %s5, %s644
        $region68: #{tpu_custom_call.1} parent=63 // pred_fallthru
          _
      $region64: #{tpu_custom_call.1} parent=5 // pred_fallthru
        _
    $region6: #{tpu_custom_call.1} parent=1 // loop_footer
      %s20 = sadd.s32 1, %s16
    $region7: #{tpu_custom_call.1} parent=1 // loop_footer_branch
      %15 = sbr.rel target = $region3
    $region8: #{tpu_custom_call.1} parent=1 // loop_exit
      _
    %646 = vsyncpa [#allocation3], 1
    %s647 = scalar_lea.sflag [#allocation3], 1
    %648 = vsyncpa %s647, 1
    %649 = vsyncpa [#allocation5], 1
    %650 = vsyncpa [#allocation8], 1

</llo_original>
